<compile_context>
chip_gen: v7x
topology: tpu7x:2x2x1
jax: 0.10.0
libtpu: 0.0.40
codegen_flags: <defaults>
</compile_context>

<pallas_src>
import functools
import math

import jax
import jax.numpy as jnp
from jax.experimental import pallas as pl
from jax.experimental.pallas import tpu as pltpu


_LANE = 128
_SUBLANE = 16                      # bf16 sublane packing (also a multiple of the f32 8)
_MIB = 1024 * 1024
_FALLBACK_VMEM_CAP = 64 * _MIB     # v7x per-TC capacity; a safe floor on every generation
_MIN_ROWS_FOR_TWO_STEPS = 2048     # below this, one grid step beats splitting the work
_PALLAS_MIN_ELEMS = 1 << 14        # tiny problems: pallas_call launch overhead dominates
_TM_CAP = 8192


def _round_up(n, m):
    return ((n + m - 1) // m) * m


def _cdiv(a, b):
    return -(-a // b)


def _vmem_budget_bytes():
    """Generation-aware VMEM budget/limit (v5e/v6e: 128 MiB physical, v7x: 64 MiB)."""
    cap = _FALLBACK_VMEM_CAP
    try:  # trace-time hardware query; fall back to the smallest (v7x) capacity
        info = pltpu.get_tpu_info()
        cap = int(getattr(info, "vmem_capacity_bytes", cap) or cap)
    except Exception:
        pass
    budget = max(cap - 24 * _MIB, 16 * _MIB)
    limit = max(cap - 16 * _MIB, budget + 4 * _MIB)
    return budget, limit


def _fused_mlp_kernel(*refs, num_layers, apply_sigmoid, compute_dtype):
    """refs = (x_ref, w0, b0, w1, b1, ..., w{L-1}, b{L-1}, o_ref).

    x_ref: (tm, K) f32 — cast to compute_dtype in-kernel (no wrapper pad/cast pass).
    w_i:   (Kin, Kout) compute dtype, hidden dims zero-padded to lane multiples at init.
    b_i:   (1, Kout) f32.
    o_ref: (tm, out_dim) f32 — true out_dim, written directly (no post-slice pass).
    """
    x_ref = refs[0]
    o_ref = refs[1 + 2 * num_layers]
    h = x_ref[...].astype(compute_dtype)                        # bf16 operands -> full-rate MXU
    for i in range(num_layers):
        w = refs[1 + 2 * i][...]
        b = refs[2 + 2 * i][...]
        y = jnp.dot(h, w, preferred_element_type=jnp.float32)   # MXU, f32 accumulate
        y = y + b                                               # VPU, f32 bias
        if i < num_layers - 1:
            h = jnp.maximum(y, 0.0).astype(compute_dtype)       # f32 ReLU, bf16 for next matmul
        else:
            h = y
    if apply_sigmoid:
        h = jax.nn.sigmoid(h)                                   # EUP slot — otherwise idle
    o_ref[...] = h.astype(o_ref.dtype)


def _pick_tile_m(M, K, out_dim, max_h, resident_bytes, budget):
    """Largest M tile that fits the budget, balanced over the grid steps."""
    # per-row VMEM cost: f32 x tile (2x buffered), f32 out tile (2x buffered),
    # f32 + bf16 intermediate activations.
    per_row = 2 * K * 4 + 2 * out_dim * 4 + max_h * (4 + 2)
    avail = budget - resident_bytes
    if avail < per_row * _SUBLANE:
        raise ValueError(
            "fused-MLP weights do not fit the VMEM budget; add a K-axis accumulator "
            "fallback before using larger hidden dims")
    tm_max = max(min((avail // per_row) // _SUBLANE * _SUBLANE, _TM_CAP), _SUBLANE)
    rows = _round_up(max(M, 1), _SUBLANE)
    nsteps = _cdiv(rows, tm_max)
    if nsteps < 2 and rows >= _MIN_ROWS_FOR_TWO_STEPS:
        nsteps = 2          # keep >=2 "parallel" grid steps so both v7x TensorCores work
    tm = min(_round_up(_cdiv(rows, nsteps), _SUBLANE), tm_max)
    return tm


def _jnp_mlp(x2d, padded_params, num_layers, compute_dtype, apply_sigmoid):
    """Plain-XLA fast path for tiny problems — same numerics as the kernel."""
    h = x2d
    for i, (w, b) in enumerate(padded_params):
        y = jnp.dot(h.astype(compute_dtype), w, preferred_element_type=jnp.float32) + b
        h = jnp.maximum(y, 0.0).astype(compute_dtype) if i < num_layers - 1 else y
    return jax.nn.sigmoid(h) if apply_sigmoid else h


def _fused_mlp(x2d, padded_params, out_dim, *, layer_dims=None,
               compute_dtype=jnp.bfloat16, apply_sigmoid=False, force_pallas=False):
    """x2d: (M, K) f32.  padded_params: [(w, b)] with w (Kin, Kout) in compute_dtype
    (hidden dims lane-padded) and b (1, Kout) f32.  Returns (M, out_dim) f32."""
    M, K = x2d.shape
    num_layers = len(padded_params)
    assert padded_params[0][0].shape[0] == K
    assert padded_params[-1][0].shape[1] == out_dim
    if layer_dims is None:
        layer_dims = [(w.shape[0], w.shape[1]) for w, _ in padded_params]

    # Tiny problems: pad nothing, launch nothing — plain XLA already optimal.
    if not force_pallas and M * K < _PALLAS_MIN_ELEMS:
        return _jnp_mlp(x2d, padded_params, num_layers, compute_dtype, apply_sigmoid)

    budget, vmem_limit = _vmem_budget_bytes()
    cdt = jnp.dtype(compute_dtype).itemsize
    # Weights/biases are VMEM-resident (constant index_map -> fetched once), but are still
    # allocated with the default 2-deep pipelining, so budget them 2x.
    resident = sum(2 * (w.size * cdt + b.size * 4) for w, b in padded_params)
    max_h = max(w.shape[1] for w, _ in padded_params)
    tm = _pick_tile_m(M, K, out_dim, max_h, resident, budget)
    grid = (_cdiv(M, tm),)   # ragged tail block: OOB rows read padding, OOB writes clipped

    in_specs = [pl.BlockSpec((tm, K), lambda i: (i, 0))]   # natural (M, K), no pre-pad pass
    flat_args = [x2d]
    for w_p, b_p in padded_params:
        in_specs.append(pl.BlockSpec(w_p.shape, lambda i: (0, 0)))   # VMEM-resident weight
        in_specs.append(pl.BlockSpec(b_p.shape, lambda i: (0, 0)))   # VMEM-resident bias
        flat_args += [w_p, b_p]

    # Advisory cost estimate with the true flops / actual bytes moved.
    cost = pl.CostEstimate(
        flops=2 * M * sum(n * k for n, k in layer_dims),
        transcendentals=M * out_dim if apply_sigmoid else 0,
        bytes_accessed=M * K * 4 + M * out_dim * 4
        + sum(w.size * cdt + b.size * 4 for w, b in padded_params),
    )

    kernel = functools.partial(_fused_mlp_kernel, num_layers=num_layers,
                               apply_sigmoid=apply_sigmoid, compute_dtype=compute_dtype)
    return pl.pallas_call(
        kernel,
        out_shape=jax.ShapeDtypeStruct((M, out_dim), jnp.float32),   # true shape, no slice
        grid_spec=pl.GridSpec(
            grid=grid,
            in_specs=in_specs,
            out_specs=pl.BlockSpec((tm, out_dim), lambda i: (i, 0)),
        ),
        compiler_params=pltpu.CompilerParams(
            dimension_semantics=("parallel",),
            vmem_limit_bytes=vmem_limit,
        ),
        cost_estimate=cost,
    )(*flat_args)


class MLPPallas:
    """Mirror of the PyTorch MLP head (num_layers Linear layers, ReLU on all but the last),
    executed as ONE fused Pallas kernel. Hidden dims are lane-padded once at init so the
    weights stay VMEM-resident; input/output keep their true dims (no wrapper pad/slice)."""

    def __init__(self, input_dim, hidden_dim, output_dim, num_layers, key,
                 compute_dtype=jnp.bfloat16, final_bias_value=None, fuse_sigmoid=False):
        self.num_layers = num_layers
        self.output_dim = output_dim
        self.compute_dtype = compute_dtype
        # The reference module returns raw logits ('service_pred_logits'); keep
        # fuse_sigmoid=False for faithful semantics, flip on to fold the downstream
        # focal sigmoid into the kernel epilogue for free.
        self.fuse_sigmoid = fuse_sigmoid
        h = [hidden_dim] * (num_layers - 1)
        dims_in = [input_dim] + h
        dims_out = h + [output_dim]
        self.layer_dims = list(zip(dims_in, dims_out))
        self.params = []          # unpadded f32 params (reference view)
        self.padded_params = []   # hidden dims lane-padded, weights cast to compute_dtype
        for li, (n, k_out) in enumerate(self.layer_dims):
            key, kw, kb = jax.random.split(key, 3)
            bound = 1.0 / math.sqrt(n)                      # nn.Linear default init
            w = jax.random.uniform(kw, (n, k_out), jnp.float32, -bound, bound)
            b = jax.random.uniform(kb, (k_out,), jnp.float32, -bound, bound)
            if final_bias_value is not None and li == num_layers - 1:
                # matches nn.init.constant_(layers[-1].bias, bias_value) in the classifier
                b = jnp.full((k_out,), final_bias_value, jnp.float32)
            self.params.append((w, b))
            n_p = n if li == 0 else _round_up(n, _LANE)                 # true input dim
            k_p = k_out if li == num_layers - 1 else _round_up(k_out, _LANE)  # true out dim
            w_p = jnp.zeros((n_p, k_p), jnp.float32).at[:n, :k_out].set(w)
            b_p = jnp.zeros((1, k_p), jnp.float32).at[0, :k_out].set(b)
            self.padded_params.append((w_p.astype(compute_dtype), b_p))

    def __call__(self, x, force_pallas=False):
        orig_shape = x.shape
        x2d = x.reshape(-1, orig_shape[-1])
        y2d = _fused_mlp(x2d, self.padded_params, self.output_dim,
                         layer_dims=self.layer_dims,
                         compute_dtype=self.compute_dtype,
                         apply_sigmoid=self.fuse_sigmoid,
                         force_pallas=force_pallas)
        return y2d.reshape(*orig_shape[:-1], self.output_dim)


def _reference_mlp(x, params, num_layers, compute_dtype):
    """Pure-JAX reference mirroring the kernel numerics (compute-dtype matmul operands,
    f32 accumulate / bias / ReLU)."""
    h = x.reshape(-1, x.shape[-1])
    for i, (w, b) in enumerate(params):
        y = jnp.dot(h.astype(compute_dtype), w.astype(compute_dtype),
                    preferred_element_type=jnp.float32) + b
        h = jnp.maximum(y, 0.0) if i < num_layers - 1 else y
    return h.reshape(*x.shape[:-1], h.shape[-1])


if __name__ == "__main__":
    key = jax.random.PRNGKey(0)
    k_param, k_x = jax.random.split(key)

    # Small shapes consistent with the classifier head's MLP (feature-last input).
    batch, seq = 2, 8
    input_dim, hidden_dim, output_dim, num_layers = 4, 32, 4, 3

    # Final-layer bias init mirrors the prior_prob init in the classifier ctor.
    prior_prob = 0.01
    bias_value = -math.log((1 - prior_prob) / prior_prob)

    mlp = MLPPallas(input_dim, hidden_dim, output_dim, num_layers, k_param,
                    compute_dtype=jnp.bfloat16, final_bias_value=bias_value)
    x = jax.random.normal(k_x, (batch, seq, input_dim), jnp.float32)

    # Force the Pallas path (the size heuristic would route this toy M to plain XLA).
    out = jax.block_until_ready(mlp(x, force_pallas=True))

    ref = _reference_mlp(x, mlp.params, num_layers, jnp.bfloat16)
    assert out.shape == (batch, seq, output_dim), out.shape
    max_err = float(jnp.max(jnp.abs(out - ref)))
    assert jnp.allclose(out, ref, atol=2e-3, rtol=2e-3), (
        "pallas mismatch vs reference, max abs err = %g" % max_err)

    # The tiny-problem plain-XLA fast path must agree as well.
    out_auto = jax.block_until_ready(mlp(x))
    assert jnp.allclose(out_auto, ref, atol=2e-3, rtol=2e-3), "jnp fast-path mismatch"

    print("KERNEL_OK")
</pallas_src>

<mosaic_0001>
module attributes {stable_mosaic.version = 11 : i64} {
  func.func @_fused_mlp_kernel(%arg0: i32, %arg1: memref<16x4xf32, #tpu.memory_space<vmem>>, %arg2: memref<4x128xbf16, #tpu.memory_space<vmem>>, %arg3: memref<1x128xf32, #tpu.memory_space<vmem>>, %arg4: memref<128x128xbf16, #tpu.memory_space<vmem>>, %arg5: memref<1x128xf32, #tpu.memory_space<vmem>>, %arg6: memref<128x4xbf16, #tpu.memory_space<vmem>>, %arg7: memref<1x4xf32, #tpu.memory_space<vmem>>, %arg8: memref<16x4xf32, #tpu.memory_space<vmem>>) attributes {dimension_semantics = [#tpu.dimension_semantics<parallel>], iteration_bounds = array<i64: 1>, scalar_prefetch = 0 : i64, scratch_operands = 0 : i64, tpu.core_type = #tpu.core_type<tc>, window_params = [{transform_indices = @transform_0, window_bounds = array<i64: 16, 4>}, {pipeline_mode = #tpu.pipeline_mode<synchronous>, transform_indices = @transform_1, window_bounds = array<i64: 4, 128>}, {pipeline_mode = #tpu.pipeline_mode<synchronous>, transform_indices = @transform_2, window_bounds = array<i64: 1, 128>}, {pipeline_mode = #tpu.pipeline_mode<synchronous>, transform_indices = @transform_3, window_bounds = array<i64: 128, 128>}, {pipeline_mode = #tpu.pipeline_mode<synchronous>, transform_indices = @transform_4, window_bounds = array<i64: 1, 128>}, {pipeline_mode = #tpu.pipeline_mode<synchronous>, transform_indices = @transform_5, window_bounds = array<i64: 128, 4>}, {pipeline_mode = #tpu.pipeline_mode<synchronous>, transform_indices = @transform_6, window_bounds = array<i64: 1, 4>}, {transform_indices = @transform_7, window_bounds = array<i64: 16, 4>}]} {
    %c0 = arith.constant 0 : index
    %c0_0 = arith.constant 0 : index
    %0 = vector.load %arg1[%c0, %c0_0] : memref<16x4xf32, #tpu.memory_space<vmem>>, vector<16x4xf32>
    %1 = arith.truncf %0 : vector<16x4xf32> to vector<16x4xbf16>
    %c0_1 = arith.constant 0 : index
    %c0_2 = arith.constant 0 : index
    %2 = vector.load %arg2[%c0_1, %c0_2] : memref<4x128xbf16, #tpu.memory_space<vmem>>, vector<4x128xbf16>
    %c0_3 = arith.constant 0 : index
    %c0_4 = arith.constant 0 : index
    %3 = vector.load %arg3[%c0_3, %c0_4] : memref<1x128xf32, #tpu.memory_space<vmem>>, vector<1x128xf32>
    %cst = arith.constant dense<0.000000e+00> : vector<16x128xf32>
    %4 = tpu.matmul %1, %2, %cst {dimension_numbers = #tpu.dot_dimension_numbers<[1], [0], [0], [1], [0, 0, 1, 1], [], []>} : vector<16x4xbf16>, vector<4x128xbf16>, vector<16x128xf32> -> vector<16x128xf32>
    %5 = vector.broadcast %3 : vector<1x128xf32> to vector<16x128xf32>
    %6 = arith.addf %4, %5 : vector<16x128xf32>
    %cst_5 = arith.constant 0.000000e+00 : f32
    %7 = vector.broadcast %cst_5 : f32 to vector<16x128xf32>
    %8 = arith.maximumf %6, %7 : vector<16x128xf32>
    %9 = arith.truncf %8 : vector<16x128xf32> to vector<16x128xbf16>
    %c0_6 = arith.constant 0 : index
    %c0_7 = arith.constant 0 : index
    %10 = vector.load %arg4[%c0_6, %c0_7] : memref<128x128xbf16, #tpu.memory_space<vmem>>, vector<128x128xbf16>
    %c0_8 = arith.constant 0 : index
    %c0_9 = arith.constant 0 : index
    %11 = vector.load %arg5[%c0_8, %c0_9] : memref<1x128xf32, #tpu.memory_space<vmem>>, vector<1x128xf32>
    %cst_10 = arith.constant dense<0.000000e+00> : vector<16x128xf32>
    %12 = tpu.matmul %9, %10, %cst_10 {dimension_numbers = #tpu.dot_dimension_numbers<[1], [0], [0], [1], [0, 0, 1, 1], [], []>} : vector<16x128xbf16>, vector<128x128xbf16>, vector<16x128xf32> -> vector<16x128xf32>
    %13 = vector.broadcast %11 : vector<1x128xf32> to vector<16x128xf32>
    %14 = arith.addf %12, %13 : vector<16x128xf32>
    %cst_11 = arith.constant 0.000000e+00 : f32
    %15 = vector.broadcast %cst_11 : f32 to vector<16x128xf32>
    %16 = arith.maximumf %14, %15 : vector<16x128xf32>
    %17 = arith.truncf %16 : vector<16x128xf32> to vector<16x128xbf16>
    %c0_12 = arith.constant 0 : index
    %c0_13 = arith.constant 0 : index
    %18 = vector.load %arg6[%c0_12, %c0_13] : memref<128x4xbf16, #tpu.memory_space<vmem>>, vector<128x4xbf16>
    %c0_14 = arith.constant 0 : index
    %c0_15 = arith.constant 0 : index
    %19 = vector.load %arg7[%c0_14, %c0_15] : memref<1x4xf32, #tpu.memory_space<vmem>>, vector<1x4xf32>
    %cst_16 = arith.constant dense<0.000000e+00> : vector<16x4xf32>
    %20 = tpu.matmul %17, %18, %cst_16 {dimension_numbers = #tpu.dot_dimension_numbers<[1], [0], [0], [1], [0, 0, 1, 1], [], []>} : vector<16x128xbf16>, vector<128x4xbf16>, vector<16x4xf32> -> vector<16x4xf32>
    %21 = vector.broadcast %19 : vector<1x4xf32> to vector<16x4xf32>
    %22 = arith.addf %20, %21 : vector<16x4xf32>
    %c0_17 = arith.constant 0 : index
    %c0_18 = arith.constant 0 : index
    %23 = vector.load %arg8[%c0_17, %c0_18] : memref<16x4xf32, #tpu.memory_space<vmem>>, vector<16x4xf32>
    tpu.vector_store %arg8[%c0_17, %c0_18], %22 {strides = array<i32>} : memref<16x4xf32, #tpu.memory_space<vmem>>, vector<16x4xf32>,
    return
  }
  func.func @transform_0(%arg0: i32) -> (i32, i32) {
    %c0_i32 = arith.constant 0 : i32
    %c0_i32_0 = arith.constant 0 : i32
    return %arg0, %c0_i32 : i32, i32
  }
  func.func @transform_1(%arg0: i32) -> (i32, i32) {
    %c0_i32 = arith.constant 0 : i32
    %c0_i32_0 = arith.constant 0 : i32
    %c0_i32_1 = arith.constant 0 : i32
    return %c0_i32, %c0_i32_0 : i32, i32
  }
  func.func @transform_2(%arg0: i32) -> (i32, i32) {
    %c0_i32 = arith.constant 0 : i32
    %c0_i32_0 = arith.constant 0 : i32
    %c0_i32_1 = arith.constant 0 : i32
    return %c0_i32, %c0_i32_0 : i32, i32
  }
  func.func @transform_3(%arg0: i32) -> (i32, i32) {
    %c0_i32 = arith.constant 0 : i32
    %c0_i32_0 = arith.constant 0 : i32
    %c0_i32_1 = arith.constant 0 : i32
    return %c0_i32, %c0_i32_0 : i32, i32
  }
  func.func @transform_4(%arg0: i32) -> (i32, i32) {
    %c0_i32 = arith.constant 0 : i32
    %c0_i32_0 = arith.constant 0 : i32
    %c0_i32_1 = arith.constant 0 : i32
    return %c0_i32, %c0_i32_0 : i32, i32
  }
  func.func @transform_5(%arg0: i32) -> (i32, i32) {
    %c0_i32 = arith.constant 0 : i32
    %c0_i32_0 = arith.constant 0 : i32
    %c0_i32_1 = arith.constant 0 : i32
    return %c0_i32, %c0_i32_0 : i32, i32
  }
  func.func @transform_6(%arg0: i32) -> (i32, i32) {
    %c0_i32 = arith.constant 0 : i32
    %c0_i32_0 = arith.constant 0 : i32
    %c0_i32_1 = arith.constant 0 : i32
    return %c0_i32, %c0_i32_0 : i32, i32
  }
  func.func @transform_7(%arg0: i32) -> (i32, i32) {
    %c0_i32 = arith.constant 0 : i32
    %c0_i32_0 = arith.constant 0 : i32
    return %arg0, %c0_i32 : i32, i32
  }
}

</mosaic_0001>

<llo_original>
// kernel: tpu_custom_call.1
$region0: #{tpu_custom_call.1}
  #allocation0 [shape = 'u32[]', space=smem, size = 0x4, offset = 0x4, fixed_abs, tag = 'smem constant byte address 0x4 - core index']
  #allocation1 [shape = 'u32[144,128]{1,0:T(1,128)}', space=vmem, size = 0x12000, scoped, tag = 'internal scratch']
  %s0 = inlined_call_operand.vmem [shape: f32[16,4], index: 0, kind: input, shape index: {}]
  %s1 = inlined_call_operand.vmem [shape: bf16[4,128], index: 1, kind: input, shape index: {}]
  %s2 = inlined_call_operand.vmem [shape: f32[1,128], index: 2, kind: input, shape index: {}]
  %s3 = inlined_call_operand.vmem [shape: bf16[128,128], index: 3, kind: input, shape index: {}]
  %s4 = inlined_call_operand.vmem [shape: f32[1,128], index: 4, kind: input, shape index: {}]
  %s5 = inlined_call_operand.vmem [shape: bf16[128,4], index: 5, kind: input, shape index: {}]
  %s6 = inlined_call_operand.vmem [shape: f32[1,4], index: 6, kind: input, shape index: {}]
  %s7 = inlined_call_operand.vmem [shape: f32[16,4], index: 7, kind: output, shape index: {}]
  %s8 = sld [smem:[#allocation0]]
  $region38: #{tpu_custom_call.1} parent=0
    _
  %s10 = ssub.s32 1, %s8
  %s11 = scalar_select 0, %s10, %s8
  // Predicated region
  $region2: #{tpu_custom_call.1} parent=0 // pred_check
    _
  $region3: #{tpu_custom_call.1} parent=0 // pred_check_branch
    %13 = sbr.rel (0) target = $region5
  $region4: #{tpu_custom_call.1} parent=0 // pred_region
    _
  $region5: #{tpu_custom_call.1} parent=0 // pred_fallthru
    _
  // Predicated region
  $region6: #{tpu_custom_call.1} parent=0 // pred_check
    _
  $region7: #{tpu_custom_call.1} parent=0 // pred_check_branch
    %15 = sbr.rel (0) target = $region9
  $region8: #{tpu_custom_call.1} parent=0 // pred_region
    _
  $region9: #{tpu_custom_call.1} parent=0 // pred_fallthru
    _
  // Predicated region
  $region10: #{tpu_custom_call.1} parent=0 // pred_check
    _
  $region11: #{tpu_custom_call.1} parent=0 // pred_check_branch
    %17 = sbr.rel (0) target = $region13
  $region12: #{tpu_custom_call.1} parent=0 // pred_region
    _
  $region13: #{tpu_custom_call.1} parent=0 // pred_fallthru
    _
  // Predicated region
  $region14: #{tpu_custom_call.1} parent=0 // pred_check
    _
  $region15: #{tpu_custom_call.1} parent=0 // pred_check_branch
    %19 = sbr.rel (0) target = $region17
  $region16: #{tpu_custom_call.1} parent=0 // pred_region
    _
  $region17: #{tpu_custom_call.1} parent=0 // pred_fallthru
    _
  // Predicated region
  $region18: #{tpu_custom_call.1} parent=0 // pred_check
    _
  $region19: #{tpu_custom_call.1} parent=0 // pred_check_branch
    %21 = sbr.rel (0) target = $region21
  $region20: #{tpu_custom_call.1} parent=0 // pred_region
    _
  $region21: #{tpu_custom_call.1} parent=0 // pred_fallthru
    _
  // Predicated region
  $region22: #{tpu_custom_call.1} parent=0 // pred_check
    _
  $region23: #{tpu_custom_call.1} parent=0 // pred_check_branch
    %23 = sbr.rel (0) target = $region25
  $region24: #{tpu_custom_call.1} parent=0 // pred_region
    _
  $region25: #{tpu_custom_call.1} parent=0 // pred_fallthru
    _
  // Predicated region
  $region26: #{tpu_custom_call.1} parent=0 // pred_check
    _
  $region27: #{tpu_custom_call.1} parent=0 // pred_check_branch
    %25 = sbr.rel (0) target = $region29
  $region28: #{tpu_custom_call.1} parent=0 // pred_region
    _
  $region29: #{tpu_custom_call.1} parent=0 // pred_fallthru
    _
  %v27 = vld [vmem:[%s0] sm:$0xff]
  %v28 = vld [vmem:[%s0 + $0x8] sm:$0xff]
  %v29 = vpack.c.bf16 %v28, %v27
  %v30 = vld [vmem:[%s1] sm:$0x3]
  %v31 = vld [vmem:[%s2] sm:$0x1]
  %v33 = vlaneseq
  %v34 = vshrl.u32 %v33, 7
  %v35 = vsub.s32 0, %v34
  %v36 = vrot.slane %v31, %v35
  %vm38 = vcmask 31744
  %v40 = vsel %vm38, %v29, 0
  %vm42 = vcmask 1041408
  %v44 = vsel %vm42, %v30, 0
  %46 = vmatprep.subr.bf16.mxu0 0
  %47 = vmatpush1.bf16.msra.mxu0 %v44
  %48 = vmatprep.subr.bf16.mxu0 0
  %49 = vmatpush1.bf16.msra.mxu0 0
  %50 = vmatprep.subr.bf16.mxu0 0
  %51 = vmatpush1.bf16.msra.mxu0 0
  %52 = vmatprep.subr.bf16.mxu0 0
  %53 = vmatpush1.bf16.msra.mxu0 0
  %54 = vmatprep.subr.bf16.mxu0 0
  %55 = vmatpush1.bf16.msra.mxu0 0
  %56 = vmatprep.subr.bf16.mxu0 0
  %57 = vmatpush1.bf16.msra.mxu0 0
  %58 = vmatprep.subr.bf16.mxu0 0
  %59 = vmatpush1.bf16.msra.mxu0 0
  %60 = vmatprep.subr.bf16.mxu0 0
  %61 = vmatpush1.bf16.msra.mxu0 0
  %62 = vmatprep.subr.bf16.mxu0 0
  %63 = vmatpush1.bf16.msra.mxu0 0
  %64 = vmatprep.subr.bf16.mxu0 0
  %65 = vmatpush1.bf16.msra.mxu0 0
  %66 = vmatprep.subr.bf16.mxu0 0
  %67 = vmatpush1.bf16.msra.mxu0 0
  %68 = vmatprep.subr.bf16.mxu0 0
  %69 = vmatpush1.bf16.msra.mxu0 0
  %70 = vmatprep.subr.bf16.mxu0 0
  %71 = vmatpush1.bf16.msra.mxu0 0
  %72 = vmatprep.subr.bf16.mxu0 0
  %73 = vmatpush1.bf16.msra.mxu0 0
  %74 = vmatprep.subr.bf16.mxu0 0
  %75 = vmatpush1.bf16.msra.mxu0 0
  %76 = vmatprep.subr.bf16.mxu0 0
  %77 = vmatpush1.bf16.msra.mxu0 0
  %78 = vmatprep.mubr.bf16.mxu0 0
  %79 = vmatmul.mubr.bf16.gmra.mrb[0].mxu0 %v40
  %v80 = vpop.f32.mrb[0].mxu0
  %v81 = vadd.f32 %v36, %v80
  %v82 = vpop.f32.mrb[0].mxu0
  %v83 = vpop.f32.mrb[0].mxu0
  %v84 = vadd.f32 %v36, %v83
  %v85 = vpop.f32.mrb[0].mxu0
  %86 = vdwg.mxu0
  %v87 = vmax.f32 %v81, 0.0
  %v88 = vmax.f32 %v84, 0.0
  %v89 = vpack.c.bf16 %v88, %v87
  %v90 = vld [vmem:[%s3] sm:$0xf]
  %v91 = vld [vmem:[%s3 + $0x4] sm:$0xf]
  %v92 = vld [vmem:[%s3 + $0x8] sm:$0xf]
  %v93 = vld [vmem:[%s3 + $0xc] sm:$0xf]
  %v94 = vld [vmem:[%s3 + $0x10] sm:$0xf]
  %v95 = vld [vmem:[%s3 + $0x14] sm:$0xf]
  %v96 = vld [vmem:[%s3 + $0x18] sm:$0xf]
  %v97 = vld [vmem:[%s3 + $0x1c] sm:$0xf]
  %v98 = vld [vmem:[%s3 + $0x20] sm:$0xf]
  %v99 = vld [vmem:[%s3 + $0x24] sm:$0xf]
  %v100 = vld [vmem:[%s3 + $0x28] sm:$0xf]
  %v101 = vld [vmem:[%s3 + $0x2c] sm:$0xf]
  %v102 = vld [vmem:[%s3 + $0x30] sm:$0xf]
  %v103 = vld [vmem:[%s3 + $0x34] sm:$0xf]
  %v104 = vld [vmem:[%s3 + $0x38] sm:$0xf]
  %v105 = vld [vmem:[%s3 + $0x3c] sm:$0xf]
  %v106 = vld [vmem:[%s4] sm:$0x1]
  %v108 = vlaneseq
  %v109 = vshrl.u32 %v108, 7
  %v110 = vsub.s32 0, %v109
  %v111 = vrot.slane %v106, %v110
  %v129 = vunpack.c.l.b16 %v90
  %v130 = vunpack.c.l.b16 %v91
  %v131 = vunpack.c.l.b16 %v92
  %v132 = vunpack.c.l.b16 %v93
  %v133 = vunpack.c.l.b16 %v94
  %v134 = vunpack.c.l.b16 %v95
  %v135 = vunpack.c.l.b16 %v96
  %v136 = vunpack.c.l.b16 %v97
  %v137 = vunpack.c.l.b16 %v98
  %v138 = vunpack.c.l.b16 %v99
  %v139 = vunpack.c.l.b16 %v100
  %v140 = vunpack.c.l.b16 %v101
  %v141 = vunpack.c.l.b16 %v102
  %v142 = vunpack.c.l.b16 %v103
  %v143 = vunpack.c.l.b16 %v104
  %v144 = vunpack.c.l.b16 %v105
  %v145 = vpack.c.b16 %v130, %v129
  %v146 = vpack.c.b16 %v132, %v131
  %v147 = vpack.c.b16 %v134, %v133
  %v148 = vpack.c.b16 %v136, %v135
  %v149 = vpack.c.b16 %v138, %v137
  %v150 = vpack.c.b16 %v140, %v139
  %v151 = vpack.c.b16 %v142, %v141
  %v152 = vpack.c.b16 %v144, %v143
  %161 = vmatprep.subr.bf16.mxu0 0
  %162 = vmatpush1.bf16.msra.mxu0 %v145
  %163 = vmatprep.subr.bf16.mxu0 0
  %164 = vmatpush1.bf16.msra.mxu0 %v146
  %165 = vmatprep.subr.bf16.mxu0 0
  %166 = vmatpush1.bf16.msra.mxu0 %v147
  %167 = vmatprep.subr.bf16.mxu0 0
  %168 = vmatpush1.bf16.msra.mxu0 %v148
  %169 = vmatprep.subr.bf16.mxu0 0
  %170 = vmatpush1.bf16.msra.mxu0 %v149
  %171 = vmatprep.subr.bf16.mxu0 0
  %172 = vmatpush1.bf16.msra.mxu0 %v150
  %173 = vmatprep.subr.bf16.mxu0 0
  %174 = vmatpush1.bf16.msra.mxu0 %v151
  %175 = vmatprep.subr.bf16.mxu0 0
  %176 = vmatpush1.bf16.msra.mxu0 %v152
  %177 = vmatprep.subr.bf16.mxu0 0
  %178 = vmatpush1.bf16.msra.mxu0 0
  %179 = vmatprep.subr.bf16.mxu0 0
  %180 = vmatpush1.bf16.msra.mxu0 0
  %181 = vmatprep.subr.bf16.mxu0 0
  %182 = vmatpush1.bf16.msra.mxu0 0
  %183 = vmatprep.subr.bf16.mxu0 0
  %184 = vmatpush1.bf16.msra.mxu0 0
  %185 = vmatprep.subr.bf16.mxu0 0
  %186 = vmatpush1.bf16.msra.mxu0 0
  %187 = vmatprep.subr.bf16.mxu0 0
  %188 = vmatpush1.bf16.msra.mxu0 0
  %189 = vmatprep.subr.bf16.mxu0 0
  %190 = vmatpush1.bf16.msra.mxu0 0
  %191 = vmatprep.subr.bf16.mxu0 0
  %192 = vmatpush1.bf16.msra.mxu0 0
  %193 = vmatprep.mubr.bf16.mxu0 0
  %194 = vmatmul.mubr.bf16.gmra.mrb[0].mxu0 %v89
  %v195 = vpop.f32.mrb[0].mxu0
  %v196 = vadd.f32 %v111, %v195
  %v197 = vpop.f32.mrb[0].mxu0
  %v198 = vpop.f32.mrb[0].mxu0
  %v199 = vadd.f32 %v111, %v198
  %v200 = vpop.f32.mrb[0].mxu0
  %201 = vdwg.mxu0
  %v202 = vmax.f32 %v196, 0.0
  %v203 = vmax.f32 %v199, 0.0
  %v204 = vpack.c.bf16 %v203, %v202
  %v205 = vld [vmem:[%s5] sm:$0xf]
  %v206 = vld [vmem:[%s5 + $0x4] sm:$0xf]
  %v207 = vld [vmem:[%s5 + $0x8] sm:$0xf]
  %v208 = vld [vmem:[%s5 + $0xc] sm:$0xf]
  %v209 = vld [vmem:[%s5 + $0x10] sm:$0xf]
  %v210 = vld [vmem:[%s5 + $0x14] sm:$0xf]
  %v211 = vld [vmem:[%s5 + $0x18] sm:$0xf]
  %v212 = vld [vmem:[%s5 + $0x1c] sm:$0xf]
  %v213 = vld [vmem:[%s5 + $0x20] sm:$0xf]
  %v214 = vld [vmem:[%s5 + $0x24] sm:$0xf]
  %v215 = vld [vmem:[%s5 + $0x28] sm:$0xf]
  %v216 = vld [vmem:[%s5 + $0x2c] sm:$0xf]
  %v217 = vld [vmem:[%s5 + $0x30] sm:$0xf]
  %v218 = vld [vmem:[%s5 + $0x34] sm:$0xf]
  %v219 = vld [vmem:[%s5 + $0x38] sm:$0xf]
  %v220 = vld [vmem:[%s5 + $0x3c] sm:$0xf]
  %v221 = vld [vmem:[%s6] sm:$0x1]
  %v223 = vlaneseq
  %v224 = vshrl.u32 %v223, 7
  %v225 = vsub.s32 0, %v224
  %v226 = vrot.slane %v221, %v225
  %v244 = vunpack.c.l.b16 %v205
  %v245 = vunpack.c.l.b16 %v206
  %v246 = vunpack.c.l.b16 %v207
  %v247 = vunpack.c.l.b16 %v208
  %v248 = vunpack.c.l.b16 %v209
  %v249 = vunpack.c.l.b16 %v210
  %v250 = vunpack.c.l.b16 %v211
  %v251 = vunpack.c.l.b16 %v212
  %v252 = vunpack.c.l.b16 %v213
  %v253 = vunpack.c.l.b16 %v214
  %v254 = vunpack.c.l.b16 %v215
  %v255 = vunpack.c.l.b16 %v216
  %v256 = vunpack.c.l.b16 %v217
  %v257 = vunpack.c.l.b16 %v218
  %v258 = vunpack.c.l.b16 %v219
  %v259 = vunpack.c.l.b16 %v220
  %v260 = vpack.c.b16 %v245, %v244
  %v261 = vpack.c.b16 %v247, %v246
  %v262 = vpack.c.b16 %v249, %v248
  %v263 = vpack.c.b16 %v251, %v250
  %v264 = vpack.c.b16 %v253, %v252
  %v265 = vpack.c.b16 %v255, %v254
  %v266 = vpack.c.b16 %v257, %v256
  %v267 = vpack.c.b16 %v259, %v258
  %276 = vmatprep.subr.bf16.mxu0 0
  %277 = vmatpush1.bf16.msra.mxu0 %v260
  %278 = vmatprep.subr.bf16.mxu0 0
  %279 = vmatpush1.bf16.msra.mxu0 %v261
  %280 = vmatprep.subr.bf16.mxu0 0
  %281 = vmatpush1.bf16.msra.mxu0 %v262
  %282 = vmatprep.subr.bf16.mxu0 0
  %283 = vmatpush1.bf16.msra.mxu0 %v263
  %284 = vmatprep.subr.bf16.mxu0 0
  %285 = vmatpush1.bf16.msra.mxu0 %v264
  %286 = vmatprep.subr.bf16.mxu0 0
  %287 = vmatpush1.bf16.msra.mxu0 %v265
  %288 = vmatprep.subr.bf16.mxu0 0
  %289 = vmatpush1.bf16.msra.mxu0 %v266
  %290 = vmatprep.subr.bf16.mxu0 0
  %291 = vmatpush1.bf16.msra.mxu0 %v267
  %292 = vmatprep.subr.bf16.mxu0 0
  %293 = vmatpush1.bf16.msra.mxu0 0
  %294 = vmatprep.subr.bf16.mxu0 0
  %295 = vmatpush1.bf16.msra.mxu0 0
  %296 = vmatprep.subr.bf16.mxu0 0
  %297 = vmatpush1.bf16.msra.mxu0 0
  %298 = vmatprep.subr.bf16.mxu0 0
  %299 = vmatpush1.bf16.msra.mxu0 0
  %300 = vmatprep.subr.bf16.mxu0 0
  %301 = vmatpush1.bf16.msra.mxu0 0
  %302 = vmatprep.subr.bf16.mxu0 0
  %303 = vmatpush1.bf16.msra.mxu0 0
  %304 = vmatprep.subr.bf16.mxu0 0
  %305 = vmatpush1.bf16.msra.mxu0 0
  %306 = vmatprep.subr.bf16.mxu0 0
  %307 = vmatpush1.bf16.msra.mxu0 0
  %308 = vmatprep.mubr.bf16.mxu0 0
  %309 = vmatmul.mubr.bf16.gmra.mrb[0].mxu0 %v204
  %v310 = vpop.f32.mrb[0].mxu0
  %v311 = vadd.f32 %v226, %v310
  %v312 = vpop.f32.mrb[0].mxu0
  %v313 = vpop.f32.mrb[0].mxu0
  %v314 = vadd.f32 %v226, %v313
  %v315 = vpop.f32.mrb[0].mxu0
  %316 = vdwg.mxu0
  %317 = vst.msk [vmem:[%s7] sm:$0xff] %vm38, %v311
  %318 = vst.msk [vmem:[%s7 + $0x8] sm:$0xff] %vm38, %v314
  // Predicated region
  $region30: #{tpu_custom_call.1} parent=0 // pred_check
    _
  $region31: #{tpu_custom_call.1} parent=0 // pred_check_branch
    %320 = sbr.rel (0) target = $region33
  $region32: #{tpu_custom_call.1} parent=0 // pred_region
    _
  $region33: #{tpu_custom_call.1} parent=0 // pred_fallthru
    _
  // Predicated region
  $region34: #{tpu_custom_call.1} parent=0 // pred_check
    _
  $region35: #{tpu_custom_call.1} parent=0 // pred_check_branch
    %322 = sbr.rel (0) target = $region37
  $region36: #{tpu_custom_call.1} parent=0 // pred_region
    _
  $region37: #{tpu_custom_call.1} parent=0 // pred_fallthru
    _

</llo_original>
